<compile_context>
chip_gen: v6e
topology: v6e:2x2x1
jax: 0.10.0
libtpu: 0.0.40
codegen_flags: <defaults>
</compile_context>

<pallas_src>
import functools

import jax
import jax.numpy as jnp
import numpy as np
from jax.experimental import pallas as pl
from jax.experimental.pallas import tpu as pltpu

LANE = 128


def _round_up(n, m):
    return ((n + m - 1) // m) * m


def vae_forward_kernel(
    x_ref, eps_ref,
    w1_ref, b1_ref,            # encoder hidden layer   (Dp, Hp), (1, Hp)
    wh_ref, bh_ref,            # fused [mu | logvar] heads (Hp, 2*Lp), (1, 2*Lp)
    wd1_ref, bd1_ref,          # decoder hidden layer   (Lp, Hp), (1, Hp)
    wdm_ref, bdm_ref,          # decoder mean layer     (Hp, Dp), (1, Dp)
    heads_ref, z_ref, loc_ref,
    *, latent_pad, non_linear,
):
    # ---- Encoder (f32 accumulation on the MXU) ----
    h = jnp.dot(x_ref[...], w1_ref[...], preferred_element_type=jnp.float32) + b1_ref[...]
    if non_linear:
        h = jnp.where(h >= 0, h, 0.01 * h)          # leaky_relu(0.01)

    heads = (jnp.dot(h.astype(wh_ref.dtype), wh_ref[...],
                     preferred_element_type=jnp.float32) + bh_ref[...])
    mu = heads[:, :latent_pad]
    logvar = heads[:, latent_pad:]

    # ---- Reparameterise in f32: z = mu + eps * exp(0.5 * logvar) ----
    z = mu + eps_ref[...] * jnp.exp(0.5 * logvar)

    # ---- Decoder ----
    hd = (jnp.dot(z.astype(wd1_ref.dtype), wd1_ref[...],
                  preferred_element_type=jnp.float32) + bd1_ref[...])
    if non_linear:
        hd = jnp.where(hd >= 0, hd, 0.01 * hd)
    loc = (jnp.dot(hd.astype(wdm_ref.dtype), wdm_ref[...],
                   preferred_element_type=jnp.float32) + bdm_ref[...])

    # ---- Lane-dense outputs ----
    heads_ref[...] = heads                          # packed [mu | logvar]
    z_ref[...] = z
    loc_ref[...] = loc


def prepare_params(params, compute_dtype=jnp.float32):
    """One-time weight prep: pad every feature dim up to a multiple of 128 (lane
    width), fuse the two encoder heads into a single [Hp, 2*Lp] weight, and cast
    the matmul weights to `compute_dtype` (biases stay f32; padding is exact)."""
    D, H = params["w_enc1"].shape
    L = params["w_enc_mu"].shape[1]
    Dp, Hp, Lp = _round_up(D, LANE), _round_up(H, LANE), _round_up(L, LANE)

    def pad2(w, r, c):
        return jnp.pad(w, ((0, r - w.shape[0]), (0, c - w.shape[1])))

    w1 = pad2(params["w_enc1"], Dp, Hp).astype(compute_dtype)
    b1 = pad2(params["b_enc1"], 1, Hp).astype(jnp.float32)
    wh = jnp.concatenate([pad2(params["w_enc_mu"], Hp, Lp),
                          pad2(params["w_enc_lv"], Hp, Lp)], axis=1).astype(compute_dtype)
    bh = jnp.concatenate([pad2(params["b_enc_mu"], 1, Lp),
                          pad2(params["b_enc_lv"], 1, Lp)], axis=1).astype(jnp.float32)
    wd1 = pad2(params["w_dec1"], Lp, Hp).astype(compute_dtype)
    bd1 = pad2(params["b_dec1"], 1, Hp).astype(jnp.float32)
    wdm = pad2(params["w_dec_mu"], Hp, Dp).astype(compute_dtype)
    bdm = pad2(params["b_dec_mu"], 1, Dp).astype(jnp.float32)

    prepped = dict(w1=w1, b1=b1, wh=wh, bh=bh, wd1=wd1, bd1=bd1, wdm=wdm, bdm=bdm,
                   logvar_out=params["logvar_out"].astype(jnp.float32))
    dims = dict(D=D, H=H, L=L, Dp=Dp, Hp=Hp, Lp=Lp)
    return prepped, dims


def vae_forward(x, eps, prepped, dims, *, block_b=512, non_linear=False):
    """Fused VAE forward.  Returns dict mimicking the PyTorch fwd_rtn, with
    x_recon represented by its (loc, scale) pair of the output Normal."""
    B, D = x.shape
    L = dims["L"]
    Dp, Lp = dims["Dp"], dims["Lp"]
    assert D == dims["D"] and eps.shape == (B, L)

    cdt = prepped["w1"].dtype

    # Batch tile: multiple of 128 (keeps MXU passes and stores unmasked on every
    # TPU generation); pad B up so the grid divides evenly.
    TB = min(block_b, _round_up(B, LANE))
    Bp = _round_up(B, TB)
    nb = Bp // TB

    xp = jnp.pad(x, ((0, Bp - B), (0, Dp - D))).astype(cdt)
    epsp = jnp.pad(eps, ((0, Bp - B), (0, Lp - L))).astype(jnp.float32)

    kernel = functools.partial(vae_forward_kernel, latent_pad=Lp,
                               non_linear=non_linear)

    def row_spec(cols):
        return pl.BlockSpec((TB, cols), lambda i: (i, 0))

    def resident(arr):
        # Constant block index -> fetched once, stays VMEM-resident across tiles.
        return pl.BlockSpec(arr.shape, lambda i: (0, 0))

    weights = (prepped["w1"], prepped["b1"], prepped["wh"], prepped["bh"],
               prepped["wd1"], prepped["bd1"], prepped["wdm"], prepped["bdm"])

    heads, z, loc = pl.pallas_call(
        kernel,
        grid=(nb,),
        in_specs=[row_spec(Dp), row_spec(Lp)] + [resident(w) for w in weights],
        out_specs=(row_spec(2 * Lp), row_spec(Lp), row_spec(Dp)),
        out_shape=(
            jax.ShapeDtypeStruct((Bp, 2 * Lp), jnp.float32),   # packed [mu | logvar]
            jax.ShapeDtypeStruct((Bp, Lp), jnp.float32),       # z
            jax.ShapeDtypeStruct((Bp, Dp), jnp.float32),       # x_recon loc
        ),
        compiler_params=pltpu.CompilerParams(
            dimension_semantics=("parallel",)),                # megacore on v7x
    )(xp, epsp, *weights)

    mu = heads[:B, :L]
    logvar = heads[:B, Lp:Lp + L]
    z = z[:B, :L]
    loc = loc[:B, :D]
    # Batch-independent Normal scale = exp(0.5 * logvar_out): plain JAX, not kernel.
    scale = jnp.exp(0.5 * prepped["logvar_out"])
    return {"x_recon": (loc, scale), "mu": mu, "logvar": logvar, "z": z}


def init_params(key, input_dim, hidden_dim, latent_dim, init_logvar=-3.0):
    """Synthetic parameters matching the PyTorch module's shapes for a single
    hidden layer (hidden_dim = [H]).  Weights stored [in, out] so the kernel
    computes x @ W + b (== PyTorch's x @ W.T + b with W stored [out, in])."""
    # TODO(synk): arbitrary-depth hidden_dim lists would require unrolling extra
    # matmul layers inside the kernel; a single hidden layer is implemented here.
    H = hidden_dim[0]
    keys = jax.random.split(key, 10)

    def lin(kw, kb, fan_in, fan_out):
        bound = 1.0 / np.sqrt(fan_in)
        w = jax.random.uniform(kw, (fan_in, fan_out), jnp.float32, -bound, bound)
        b = jax.random.uniform(kb, (1, fan_out), jnp.float32, -bound, bound)
        return w, b

    w_enc1, b_enc1 = lin(keys[0], keys[1], input_dim, H)
    w_enc_mu, b_enc_mu = lin(keys[2], keys[3], H, latent_dim)
    w_enc_lv, b_enc_lv = lin(keys[4], keys[5], H, latent_dim)
    w_dec1, b_dec1 = lin(keys[6], keys[7], latent_dim, H)
    w_dec_mu, b_dec_mu = lin(keys[8], keys[9], H, input_dim)
    logvar_out = jnp.full((1, input_dim), init_logvar, dtype=jnp.float32)

    return dict(
        w_enc1=w_enc1, b_enc1=b_enc1,
        w_enc_mu=w_enc_mu, b_enc_mu=b_enc_mu,
        w_enc_lv=w_enc_lv, b_enc_lv=b_enc_lv,
        w_dec1=w_dec1, b_dec1=b_dec1,
        w_dec_mu=w_dec_mu, b_dec_mu=b_dec_mu,
        logvar_out=logvar_out,
    )


def vae_forward_ref(x, eps, p):
    """Pure-JAX reference mirroring the PyTorch forward (non_linear=False)."""
    h = x @ p["w_enc1"] + p["b_enc1"]
    mu = h @ p["w_enc_mu"] + p["b_enc_mu"]
    logvar = h @ p["w_enc_lv"] + p["b_enc_lv"]
    z = mu + eps * jnp.exp(0.5 * logvar)
    hd = z @ p["w_dec1"] + p["b_dec1"]
    loc = hd @ p["w_dec_mu"] + p["b_dec_mu"]
    scale = jnp.exp(0.5 * p["logvar_out"])
    return mu, logvar, z, loc, scale


if __name__ == "__main__":
    B = 8          # batch
    INPUT_DIM = 16
    HIDDEN = [32]
    LATENT = 8

    key = jax.random.PRNGKey(0)
    kx, keps, kp = jax.random.split(key, 3)

    x = jax.random.normal(kx, (B, INPUT_DIM), dtype=jnp.float32)
    eps = jax.random.normal(keps, (B, LATENT), dtype=jnp.float32)  # torch.randn_like(mu)
    params = init_params(kp, INPUT_DIM, HIDDEN, LATENT)

    mu_r, lv_r, z_r, loc_r, scale_r = vae_forward_ref(x, eps, params)

    # ---- f32 compute: exact-path correctness check ----
    prepped, dims = prepare_params(params, compute_dtype=jnp.float32)
    out = vae_forward(x, eps, prepped, dims)
    jax.block_until_ready(out)
    np.testing.assert_allclose(np.asarray(out["mu"]), np.asarray(mu_r), rtol=1e-5, atol=1e-5)
    np.testing.assert_allclose(np.asarray(out["logvar"]), np.asarray(lv_r), rtol=1e-5, atol=1e-5)
    np.testing.assert_allclose(np.asarray(out["z"]), np.asarray(z_r), rtol=1e-5, atol=1e-5)
    np.testing.assert_allclose(np.asarray(out["x_recon"][0]), np.asarray(loc_r), rtol=1e-5, atol=1e-5)
    np.testing.assert_allclose(np.asarray(out["x_recon"][1]), np.asarray(scale_r), rtol=1e-5, atol=1e-5)

    # ---- bf16 weights/activations (f32 accumulation + f32 reparameterise):
    #      halves HBM traffic and doubles MXU throughput; loose-tolerance check ----
    prepped_bf16, dims_bf16 = prepare_params(params, compute_dtype=jnp.bfloat16)
    out_bf16 = vae_forward(x, eps, prepped_bf16, dims_bf16)
    jax.block_until_ready(out_bf16)
    np.testing.assert_allclose(np.asarray(out_bf16["mu"]), np.asarray(mu_r), rtol=5e-2, atol=5e-2)
    np.testing.assert_allclose(np.asarray(out_bf16["logvar"]), np.asarray(lv_r), rtol=5e-2, atol=5e-2)
    np.testing.assert_allclose(np.asarray(out_bf16["x_recon"][0]), np.asarray(loc_r), rtol=5e-2, atol=5e-2)

    print("KERNEL_OK")
</pallas_src>

<mosaic_0001>
module attributes {stable_mosaic.version = 11 : i64} {
  func.func @vae_forward_kernel(%arg0: i32, %arg1: memref<128x128xf32, #tpu.memory_space<vmem>>, %arg2: memref<128x128xf32, #tpu.memory_space<vmem>>, %arg3: memref<128x128xf32, #tpu.memory_space<vmem>>, %arg4: memref<1x128xf32, #tpu.memory_space<vmem>>, %arg5: memref<128x256xf32, #tpu.memory_space<vmem>>, %arg6: memref<1x256xf32, #tpu.memory_space<vmem>>, %arg7: memref<128x128xf32, #tpu.memory_space<vmem>>, %arg8: memref<1x128xf32, #tpu.memory_space<vmem>>, %arg9: memref<128x128xf32, #tpu.memory_space<vmem>>, %arg10: memref<1x128xf32, #tpu.memory_space<vmem>>, %arg11: memref<128x256xf32, #tpu.memory_space<vmem>>, %arg12: memref<128x128xf32, #tpu.memory_space<vmem>>, %arg13: memref<128x128xf32, #tpu.memory_space<vmem>>) attributes {dimension_semantics = [#tpu.dimension_semantics<parallel>], iteration_bounds = array<i64: 1>, scalar_prefetch = 0 : i64, scratch_operands = 0 : i64, tpu.core_type = #tpu.core_type<tc>, window_params = [{transform_indices = @transform_0, window_bounds = array<i64: 128, 128>}, {transform_indices = @transform_1, window_bounds = array<i64: 128, 128>}, {pipeline_mode = #tpu.pipeline_mode<synchronous>, transform_indices = @transform_2, window_bounds = array<i64: 128, 128>}, {pipeline_mode = #tpu.pipeline_mode<synchronous>, transform_indices = @transform_3, window_bounds = array<i64: 1, 128>}, {pipeline_mode = #tpu.pipeline_mode<synchronous>, transform_indices = @transform_4, window_bounds = array<i64: 128, 256>}, {pipeline_mode = #tpu.pipeline_mode<synchronous>, transform_indices = @transform_5, window_bounds = array<i64: 1, 256>}, {pipeline_mode = #tpu.pipeline_mode<synchronous>, transform_indices = @transform_6, window_bounds = array<i64: 128, 128>}, {pipeline_mode = #tpu.pipeline_mode<synchronous>, transform_indices = @transform_7, window_bounds = array<i64: 1, 128>}, {pipeline_mode = #tpu.pipeline_mode<synchronous>, transform_indices = @transform_8, window_bounds = array<i64: 128, 128>}, {pipeline_mode = #tpu.pipeline_mode<synchronous>, transform_indices = @transform_9, window_bounds = array<i64: 1, 128>}, {transform_indices = @transform_10, window_bounds = array<i64: 128, 256>}, {transform_indices = @transform_11, window_bounds = array<i64: 128, 128>}, {transform_indices = @transform_12, window_bounds = array<i64: 128, 128>}]} {
    %c0 = arith.constant 0 : index
    %c0_0 = arith.constant 0 : index
    %0 = vector.load %arg1[%c0, %c0_0] : memref<128x128xf32, #tpu.memory_space<vmem>>, vector<128x128xf32>
    %c0_1 = arith.constant 0 : index
    %c0_2 = arith.constant 0 : index
    %1 = vector.load %arg3[%c0_1, %c0_2] : memref<128x128xf32, #tpu.memory_space<vmem>>, vector<128x128xf32>
    %cst = arith.constant dense<0.000000e+00> : vector<128x128xf32>
    %2 = tpu.matmul %0, %1, %cst {dimension_numbers = #tpu.dot_dimension_numbers<[1], [0], [0], [1], [0, 0, 1, 1], [], []>} : vector<128x128xf32>, vector<128x128xf32>, vector<128x128xf32> -> vector<128x128xf32>
    %c0_3 = arith.constant 0 : index
    %c0_4 = arith.constant 0 : index
    %3 = vector.load %arg4[%c0_3, %c0_4] : memref<1x128xf32, #tpu.memory_space<vmem>>, vector<1x128xf32>
    %4 = vector.broadcast %3 : vector<1x128xf32> to vector<128x128xf32>
    %5 = arith.addf %2, %4 : vector<128x128xf32>
    %c0_5 = arith.constant 0 : index
    %c0_6 = arith.constant 0 : index
    %6 = vector.load %arg5[%c0_5, %c0_6] : memref<128x256xf32, #tpu.memory_space<vmem>>, vector<128x256xf32>
    %cst_7 = arith.constant dense<0.000000e+00> : vector<128x256xf32>
    %7 = tpu.matmul %5, %6, %cst_7 {dimension_numbers = #tpu.dot_dimension_numbers<[1], [0], [0], [1], [0, 0, 1, 1], [], []>} : vector<128x128xf32>, vector<128x256xf32>, vector<128x256xf32> -> vector<128x256xf32>
    %c0_8 = arith.constant 0 : index
    %c0_9 = arith.constant 0 : index
    %8 = vector.load %arg6[%c0_8, %c0_9] : memref<1x256xf32, #tpu.memory_space<vmem>>, vector<1x256xf32>
    %9 = vector.broadcast %8 : vector<1x256xf32> to vector<128x256xf32>
    %10 = arith.addf %7, %9 : vector<128x256xf32>
    %11 = vector.extract_strided_slice %10 {offsets = [0, 0], sizes = [128, 128], strides = [1, 1]} : vector<128x256xf32> to vector<128x128xf32>
    %12 = vector.extract_strided_slice %10 {offsets = [0, 128], sizes = [128, 128], strides = [1, 1]} : vector<128x256xf32> to vector<128x128xf32>
    %c0_10 = arith.constant 0 : index
    %c0_11 = arith.constant 0 : index
    %13 = vector.load %arg2[%c0_10, %c0_11] : memref<128x128xf32, #tpu.memory_space<vmem>>, vector<128x128xf32>
    %cst_12 = arith.constant 5.000000e-01 : f32
    %14 = vector.broadcast %cst_12 : f32 to vector<128x128xf32>
    %15 = arith.mulf %14, %12 : vector<128x128xf32>
    %16 = math.exp %15 : vector<128x128xf32>
    %17 = arith.mulf %13, %16 : vector<128x128xf32>
    %18 = arith.addf %11, %17 : vector<128x128xf32>
    %c0_13 = arith.constant 0 : index
    %c0_14 = arith.constant 0 : index
    %19 = vector.load %arg7[%c0_13, %c0_14] : memref<128x128xf32, #tpu.memory_space<vmem>>, vector<128x128xf32>
    %cst_15 = arith.constant dense<0.000000e+00> : vector<128x128xf32>
    %20 = tpu.matmul %18, %19, %cst_15 {dimension_numbers = #tpu.dot_dimension_numbers<[1], [0], [0], [1], [0, 0, 1, 1], [], []>} : vector<128x128xf32>, vector<128x128xf32>, vector<128x128xf32> -> vector<128x128xf32>
    %c0_16 = arith.constant 0 : index
    %c0_17 = arith.constant 0 : index
    %21 = vector.load %arg8[%c0_16, %c0_17] : memref<1x128xf32, #tpu.memory_space<vmem>>, vector<1x128xf32>
    %22 = vector.broadcast %21 : vector<1x128xf32> to vector<128x128xf32>
    %23 = arith.addf %20, %22 : vector<128x128xf32>
    %c0_18 = arith.constant 0 : index
    %c0_19 = arith.constant 0 : index
    %24 = vector.load %arg9[%c0_18, %c0_19] : memref<128x128xf32, #tpu.memory_space<vmem>>, vector<128x128xf32>
    %cst_20 = arith.constant dense<0.000000e+00> : vector<128x128xf32>
    %25 = tpu.matmul %23, %24, %cst_20 {dimension_numbers = #tpu.dot_dimension_numbers<[1], [0], [0], [1], [0, 0, 1, 1], [], []>} : vector<128x128xf32>, vector<128x128xf32>, vector<128x128xf32> -> vector<128x128xf32>
    %c0_21 = arith.constant 0 : index
    %c0_22 = arith.constant 0 : index
    %26 = vector.load %arg10[%c0_21, %c0_22] : memref<1x128xf32, #tpu.memory_space<vmem>>, vector<1x128xf32>
    %27 = vector.broadcast %26 : vector<1x128xf32> to vector<128x128xf32>
    %28 = arith.addf %25, %27 : vector<128x128xf32>
    %c0_23 = arith.constant 0 : index
    %c0_24 = arith.constant 0 : index
    %29 = vector.load %arg11[%c0_23, %c0_24] : memref<128x256xf32, #tpu.memory_space<vmem>>, vector<128x256xf32>
    tpu.vector_store %arg11[%c0_23, %c0_24], %10 {strides = array<i32>} : memref<128x256xf32, #tpu.memory_space<vmem>>, vector<128x256xf32>,
    %c0_25 = arith.constant 0 : index
    %c0_26 = arith.constant 0 : index
    %30 = vector.load %arg12[%c0_25, %c0_26] : memref<128x128xf32, #tpu.memory_space<vmem>>, vector<128x128xf32>
    tpu.vector_store %arg12[%c0_25, %c0_26], %18 {strides = array<i32>} : memref<128x128xf32, #tpu.memory_space<vmem>>, vector<128x128xf32>,
    %c0_27 = arith.constant 0 : index
    %c0_28 = arith.constant 0 : index
    %31 = vector.load %arg13[%c0_27, %c0_28] : memref<128x128xf32, #tpu.memory_space<vmem>>, vector<128x128xf32>
    tpu.vector_store %arg13[%c0_27, %c0_28], %28 {strides = array<i32>} : memref<128x128xf32, #tpu.memory_space<vmem>>, vector<128x128xf32>,
    return
  }
  func.func @transform_0(%arg0: i32) -> (i32, i32) {
    %c0_i32 = arith.constant 0 : i32
    %c0_i32_0 = arith.constant 0 : i32
    return %arg0, %c0_i32 : i32, i32
  }
  func.func @transform_1(%arg0: i32) -> (i32, i32) {
    %c0_i32 = arith.constant 0 : i32
    %c0_i32_0 = arith.constant 0 : i32
    return %arg0, %c0_i32 : i32, i32
  }
  func.func @transform_2(%arg0: i32) -> (i32, i32) {
    %c0_i32 = arith.constant 0 : i32
    %c0_i32_0 = arith.constant 0 : i32
    %c0_i32_1 = arith.constant 0 : i32
    return %c0_i32, %c0_i32_0 : i32, i32
  }
  func.func @transform_3(%arg0: i32) -> (i32, i32) {
    %c0_i32 = arith.constant 0 : i32
    %c0_i32_0 = arith.constant 0 : i32
    %c0_i32_1 = arith.constant 0 : i32
    return %c0_i32, %c0_i32_0 : i32, i32
  }
  func.func @transform_4(%arg0: i32) -> (i32, i32) {
    %c0_i32 = arith.constant 0 : i32
    %c0_i32_0 = arith.constant 0 : i32
    %c0_i32_1 = arith.constant 0 : i32
    return %c0_i32, %c0_i32_0 : i32, i32
  }
  func.func @transform_5(%arg0: i32) -> (i32, i32) {
    %c0_i32 = arith.constant 0 : i32
    %c0_i32_0 = arith.constant 0 : i32
    %c0_i32_1 = arith.constant 0 : i32
    return %c0_i32, %c0_i32_0 : i32, i32
  }
  func.func @transform_6(%arg0: i32) -> (i32, i32) {
    %c0_i32 = arith.constant 0 : i32
    %c0_i32_0 = arith.constant 0 : i32
    %c0_i32_1 = arith.constant 0 : i32
    return %c0_i32, %c0_i32_0 : i32, i32
  }
  func.func @transform_7(%arg0: i32) -> (i32, i32) {
    %c0_i32 = arith.constant 0 : i32
    %c0_i32_0 = arith.constant 0 : i32
    %c0_i32_1 = arith.constant 0 : i32
    return %c0_i32, %c0_i32_0 : i32, i32
  }
  func.func @transform_8(%arg0: i32) -> (i32, i32) {
    %c0_i32 = arith.constant 0 : i32
    %c0_i32_0 = arith.constant 0 : i32
    %c0_i32_1 = arith.constant 0 : i32
    return %c0_i32, %c0_i32_0 : i32, i32
  }
  func.func @transform_9(%arg0: i32) -> (i32, i32) {
    %c0_i32 = arith.constant 0 : i32
    %c0_i32_0 = arith.constant 0 : i32
    %c0_i32_1 = arith.constant 0 : i32
    return %c0_i32, %c0_i32_0 : i32, i32
  }
  func.func @transform_10(%arg0: i32) -> (i32, i32) {
    %c0_i32 = arith.constant 0 : i32
    %c0_i32_0 = arith.constant 0 : i32
    return %arg0, %c0_i32 : i32, i32
  }
  func.func @transform_11(%arg0: i32) -> (i32, i32) {
    %c0_i32 = arith.constant 0 : i32
    %c0_i32_0 = arith.constant 0 : i32
    return %arg0, %c0_i32 : i32, i32
  }
  func.func @transform_12(%arg0: i32) -> (i32, i32) {
    %c0_i32 = arith.constant 0 : i32
    %c0_i32_0 = arith.constant 0 : i32
    return %arg0, %c0_i32 : i32, i32
  }
}

</mosaic_0001>

<llo_original>
// kernel: tpu_custom_call.1
$region0: #{tpu_custom_call.1}
  #allocation0 [shape = 'u32[]', space=smem, size = 0x4, offset = 0x4, fixed_abs, tag = 'smem constant byte address 0x4 - core index']
  #allocation1 [shape = 'u32[144,128]{1,0:T(1,128)}', space=vmem, size = 0x12000, scoped, tag = 'internal scratch']
  %s0 = inlined_call_operand.hbm [shape: f32[128,128], index: 0, kind: input, shape index: {}]
  %s1 = inlined_call_operand.hbm [shape: f32[128,128], index: 1, kind: input, shape index: {}]
  %s2 = inlined_call_operand.hbm [shape: f32[128,128], index: 2, kind: input, shape index: {}]
  %s3 = inlined_call_operand.vmem [shape: f32[1,128], index: 3, kind: input, shape index: {}]
  %s4 = inlined_call_operand.hbm [shape: f32[128,256], index: 4, kind: input, shape index: {}]
  %s5 = inlined_call_operand.vmem [shape: f32[1,256], index: 5, kind: input, shape index: {}]
  %s6 = inlined_call_operand.hbm [shape: f32[128,128], index: 6, kind: input, shape index: {}]
  %s7 = inlined_call_operand.vmem [shape: f32[1,128], index: 7, kind: input, shape index: {}]
  %s8 = inlined_call_operand.hbm [shape: f32[128,128], index: 8, kind: input, shape index: {}]
  %s9 = inlined_call_operand.vmem [shape: f32[1,128], index: 9, kind: input, shape index: {}]
  %s10 = inlined_call_operand.hbm [shape: f32[128,256], index: 10, kind: output, shape index: {0}]
  %s11 = inlined_call_operand.hbm [shape: f32[128,128], index: 11, kind: output, shape index: {1}]
  %s12 = inlined_call_operand.hbm [shape: f32[128,128], index: 12, kind: output, shape index: {2}]
  %13 = xla_tuple %s10, %s11, %s12
  %s14 = sld [smem:[#allocation0]]
  $region90: #{tpu_custom_call.1} parent=0
    _
  %s16 = ssub.s32 1, %s14
  %s17 = scalar_select 0, %s16, %s14
  $region1: #{tpu_custom_call.1} parent=0
    #allocation2 [shape = 'u8[65536]{0}', space=vmem, size = 0x10000, scoped, tag = 'input window, operand 0, single buffered']
    #allocation3 [shape = 's32[1]{0}', space=sflag, size = 0x4, scoped, tag = 'scoped memory for tpu_custom_call.1']
    #allocation4 [shape = 's32[1]{0}', space=sflag, size = 0x4, scoped, tag = 'scoped memory for tpu_custom_call.1']
    #allocation5 [shape = 'u8[65536]{0}', space=vmem, size = 0x10000, scoped, tag = 'input window, operand 1, single buffered']
    #allocation6 [shape = 's32[1]{0}', space=sflag, size = 0x4, scoped, tag = 'scoped memory for tpu_custom_call.1']
    #allocation7 [shape = 'u8[65536]{0}', space=vmem, size = 0x10000, scoped, tag = 'input window, operand 2, single buffered']
    #allocation8 [shape = 'u8[131072]{0}', space=vmem, size = 0x20000, scoped, tag = 'input window, operand 4, single buffered']
    #allocation9 [shape = 's32[1]{0}', space=sflag, size = 0x4, scoped, tag = 'scoped memory for tpu_custom_call.1']
    #allocation10 [shape = 'u8[65536]{0}', space=vmem, size = 0x10000, scoped, tag = 'input window, operand 6, single buffered']
    #allocation11 [shape = 'u8[65536]{0}', space=vmem, size = 0x10000, scoped, tag = 'input window, operand 8, single buffered']
    #allocation12 [shape = 's32[1]{0}', space=sflag, size = 0x4, scoped, tag = 'scoped memory for tpu_custom_call.1']
    #allocation13 [shape = 'u8[131072]{0}', space=vmem, size = 0x20000, scoped, tag = 'output window, operand 0, single buffered']
    #allocation14 [shape = 'u8[65536]{0}', space=vmem, size = 0x10000, scoped, tag = 'output window, operand 1, single buffered']
    #allocation15 [shape = 's32[1]{0}', space=sflag, size = 0x4, scoped, tag = 'scoped memory for tpu_custom_call.1']
    #allocation16 [shape = 'u8[65536]{0}', space=vmem, size = 0x10000, scoped, tag = 'output window, operand 2, single buffered']
    %18 = vsyncpa [#allocation3], 0
    %19 = vsyncpa [#allocation6], 0
    %20 = vsyncpa [#allocation9], 0
    %21 = vsyncpa [#allocation12], 0
    %22 = vsyncpa [#allocation4], 0
    %23 = vsyncpa [#allocation15], 0
    // Predicated region
    $region2: #{tpu_custom_call.1} parent=1 // pred_check
      _
    $region3: #{tpu_custom_call.1} parent=1 // pred_check_branch
      %25 = sbr.rel (0) target = $region5
    $region4: #{tpu_custom_call.1} parent=1 // pred_region
      %s27 = ssub.s32 2048, 2048
      %28 = vsyncadd [#allocation3], %s27
      %s29 = sshll.u32 [#allocation2], 4
      %s30 = int_to_ptr.vmem [resolvable:$true] %s29
      %35 = dma.hbm_to_vmem [thread:$0]  %s0, 2048, %s30, [#allocation3], 128, 128, 8
    $region5: #{tpu_custom_call.1} parent=1 // pred_fallthru
      _
    // Predicated region
    $region6: #{tpu_custom_call.1} parent=1 // pred_check
      _
    $region7: #{tpu_custom_call.1} parent=1 // pred_check_branch
      %37 = sbr.rel (0) target = $region9
    $region8: #{tpu_custom_call.1} parent=1 // pred_region
      %s39 = ssub.s32 2048, 2048
      %40 = vsyncadd [#allocation6], %s39
      %s41 = sshll.u32 [#allocation5], 4
      %s42 = int_to_ptr.vmem [resolvable:$true] %s41
      %47 = dma.hbm_to_vmem [thread:$0]  %s1, 2048, %s42, [#allocation6], 128, 128, 8
    $region9: #{tpu_custom_call.1} parent=1 // pred_fallthru
      _
    // Predicated region
    $region10: #{tpu_custom_call.1} parent=1 // pred_check
      _
    $region11: #{tpu_custom_call.1} parent=1 // pred_check_branch
      %49 = sbr.rel (0) target = $region13
    $region12: #{tpu_custom_call.1} parent=1 // pred_region
      %s51 = ssub.s32 2048, 2048
      %52 = vsyncadd [#allocation6], %s51
      %s53 = sshll.u32 [#allocation7], 4
      %s54 = int_to_ptr.vmem [resolvable:$true] %s53
      %59 = dma.hbm_to_vmem [thread:$0]  %s2, 2048, %s54, [#allocation6], 128, 128, 8
    $region13: #{tpu_custom_call.1} parent=1 // pred_fallthru
      _
    // Predicated region
    $region14: #{tpu_custom_call.1} parent=1 // pred_check
      _
    $region15: #{tpu_custom_call.1} parent=1 // pred_check_branch
      %61 = sbr.rel (0) target = $region17
    $region16: #{tpu_custom_call.1} parent=1 // pred_region
      _
    $region17: #{tpu_custom_call.1} parent=1 // pred_fallthru
      _
    // Predicated region
    $region18: #{tpu_custom_call.1} parent=1 // pred_check
      _
    $region19: #{tpu_custom_call.1} parent=1 // pred_check_branch
      %63 = sbr.rel (0) target = $region21
    $region20: #{tpu_custom_call.1} parent=1 // pred_region
      %s65 = ssub.s32 4096, 4096
      %66 = vsyncadd [#allocation9], %s65
      %s67 = sshll.u32 [#allocation8], 4
      %s68 = int_to_ptr.vmem [resolvable:$true] %s67
      %73 = dma.hbm_to_vmem [thread:$0]  %s4, 4096, %s68, [#allocation9], 256, 256, 16
    $region21: #{tpu_custom_call.1} parent=1 // pred_fallthru
      _
    // Predicated region
    $region22: #{tpu_custom_call.1} parent=1 // pred_check
      _
    $region23: #{tpu_custom_call.1} parent=1 // pred_check_branch
      %75 = sbr.rel (0) target = $region25
    $region24: #{tpu_custom_call.1} parent=1 // pred_region
      _
    $region25: #{tpu_custom_call.1} parent=1 // pred_fallthru
      _
    // Predicated region
    $region26: #{tpu_custom_call.1} parent=1 // pred_check
      _
    $region27: #{tpu_custom_call.1} parent=1 // pred_check_branch
      %77 = sbr.rel (0) target = $region29
    $region28: #{tpu_custom_call.1} parent=1 // pred_region
      %s79 = ssub.s32 2048, 2048
      %80 = vsyncadd [#allocation9], %s79
      %s81 = sshll.u32 [#allocation10], 4
      %s82 = int_to_ptr.vmem [resolvable:$true] %s81
      %87 = dma.hbm_to_vmem [thread:$0]  %s6, 2048, %s82, [#allocation9], 128, 128, 8
    $region29: #{tpu_custom_call.1} parent=1 // pred_fallthru
      _
    // Predicated region
    $region30: #{tpu_custom_call.1} parent=1 // pred_check
      _
    $region31: #{tpu_custom_call.1} parent=1 // pred_check_branch
      %89 = sbr.rel (0) target = $region33
    $region32: #{tpu_custom_call.1} parent=1 // pred_region
      _
    $region33: #{tpu_custom_call.1} parent=1 // pred_fallthru
      _
    // Predicated region
    $region34: #{tpu_custom_call.1} parent=1 // pred_check
      _
    $region35: #{tpu_custom_call.1} parent=1 // pred_check_branch
      %91 = sbr.rel (0) target = $region37
    $region36: #{tpu_custom_call.1} parent=1 // pred_region
      %s93 = ssub.s32 2048, 2048
      %94 = vsyncadd [#allocation12], %s93
      %s95 = sshll.u32 [#allocation11], 4
      %s96 = int_to_ptr.vmem [resolvable:$true] %s95
      %101 = dma.hbm_to_vmem [thread:$0]  %s8, 2048, %s96, [#allocation12], 128, 128, 8
    $region37: #{tpu_custom_call.1} parent=1 // pred_fallthru
      _
    // Predicated region
    $region38: #{tpu_custom_call.1} parent=1 // pred_check
      _
    $region39: #{tpu_custom_call.1} parent=1 // pred_check_branch
      %103 = sbr.rel (0) target = $region41
    $region40: #{tpu_custom_call.1} parent=1 // pred_region
      _
    $region41: #{tpu_custom_call.1} parent=1 // pred_fallthru
      _
    // Predicated region
    $region42: #{tpu_custom_call.1} parent=1 // pred_check
      _
    $region43: #{tpu_custom_call.1} parent=1 // pred_check_branch
      %105 = sbr.rel (0) target = $region45
    $region44: #{tpu_custom_call.1} parent=1 // pred_region
      %106 = dma.done [#allocation3], 2048
    $region45: #{tpu_custom_call.1} parent=1 // pred_fallthru
      _
    // Predicated region
    $region46: #{tpu_custom_call.1} parent=1 // pred_check
      _
    $region47: #{tpu_custom_call.1} parent=1 // pred_check_branch
      %108 = sbr.rel (0) target = $region49
    $region48: #{tpu_custom_call.1} parent=1 // pred_region
      %109 = dma.done [#allocation6], 2048
    $region49: #{tpu_custom_call.1} parent=1 // pred_fallthru
      _
    // Predicated region
    $region50: #{tpu_custom_call.1} parent=1 // pred_check
      _
    $region51: #{tpu_custom_call.1} parent=1 // pred_check_branch
      %111 = sbr.rel (0) target = $region53
    $region52: #{tpu_custom_call.1} parent=1 // pred_region
      %112 = dma.done [#allocation6], 2048
    $region53: #{tpu_custom_call.1} parent=1 // pred_fallthru
      _
    // Predicated region
    $region54: #{tpu_custom_call.1} parent=1 // pred_check
      _
    $region55: #{tpu_custom_call.1} parent=1 // pred_check_branch
      %114 = sbr.rel (0) target = $region57
    $region56: #{tpu_custom_call.1} parent=1 // pred_region
      %115 = dma.done [#allocation9], 4096
    $region57: #{tpu_custom_call.1} parent=1 // pred_fallthru
      _
    // Predicated region
    $region58: #{tpu_custom_call.1} parent=1 // pred_check
      _
    $region59: #{tpu_custom_call.1} parent=1 // pred_check_branch
      %117 = sbr.rel (0) target = $region61
    $region60: #{tpu_custom_call.1} parent=1 // pred_region
      %118 = dma.done [#allocation9], 2048
    $region61: #{tpu_custom_call.1} parent=1 // pred_fallthru
      _
    // Predicated region
    $region62: #{tpu_custom_call.1} parent=1 // pred_check
      _
    $region63: #{tpu_custom_call.1} parent=1 // pred_check_branch
      %120 = sbr.rel (0) target = $region65
    $region64: #{tpu_custom_call.1} parent=1 // pred_region
      %121 = dma.done [#allocation12], 2048
    $region65: #{tpu_custom_call.1} parent=1 // pred_fallthru
      _
    %v122 = vld [vmem:[#allocation2] sm:$0xff]
    %v123 = vld [vmem:[#allocation2 + $0x8] sm:$0xff]
    %v124 = vld [vmem:[#allocation2 + $0x10] sm:$0xff]
    %v125 = vld [vmem:[#allocation2 + $0x18] sm:$0xff]
    %v126 = vld [vmem:[#allocation2 + $0x20] sm:$0xff]
    %v127 = vld [vmem:[#allocation2 + $0x28] sm:$0xff]
    %v128 = vld [vmem:[#allocation2 + $0x30] sm:$0xff]
    %v129 = vld [vmem:[#allocation2 + $0x38] sm:$0xff]
    %v130 = vld [vmem:[#allocation2 + $0x40] sm:$0xff]
    %v131 = vld [vmem:[#allocation2 + $0x48] sm:$0xff]
    %v132 = vld [vmem:[#allocation2 + $0x50] sm:$0xff]
    %v133 = vld [vmem:[#allocation2 + $0x58] sm:$0xff]
    %v134 = vld [vmem:[#allocation2 + $0x60] sm:$0xff]
    %v135 = vld [vmem:[#allocation2 + $0x68] sm:$0xff]
    %v136 = vld [vmem:[#allocation2 + $0x70] sm:$0xff]
    %v137 = vld [vmem:[#allocation2 + $0x78] sm:$0xff]
    %v138 = vld [vmem:[#allocation7] sm:$0xff]
    %v139 = vld [vmem:[#allocation7 + $0x8] sm:$0xff]
    %v140 = vld [vmem:[#allocation7 + $0x10] sm:$0xff]
    %v141 = vld [vmem:[#allocation7 + $0x18] sm:$0xff]
    %v142 = vld [vmem:[#allocation7 + $0x20] sm:$0xff]
    %v143 = vld [vmem:[#allocation7 + $0x28] sm:$0xff]
    %v144 = vld [vmem:[#allocation7 + $0x30] sm:$0xff]
    %v145 = vld [vmem:[#allocation7 + $0x38] sm:$0xff]
    %v146 = vld [vmem:[#allocation7 + $0x40] sm:$0xff]
    %v147 = vld [vmem:[#allocation7 + $0x48] sm:$0xff]
    %v148 = vld [vmem:[#allocation7 + $0x50] sm:$0xff]
    %v149 = vld [vmem:[#allocation7 + $0x58] sm:$0xff]
    %v150 = vld [vmem:[#allocation7 + $0x60] sm:$0xff]
    %v151 = vld [vmem:[#allocation7 + $0x68] sm:$0xff]
    %v152 = vld [vmem:[#allocation7 + $0x70] sm:$0xff]
    %v153 = vld [vmem:[#allocation7 + $0x78] sm:$0xff]
    %v154 = vld [vmem:[%s3] sm:$0x1]
    %v156 = vlaneseq
    %v157 = vshrl.u32 %v156, 7
    %v158 = vsub.s32 0, %v157
    %v159 = vrot.slane %v154, %v158
    %161 = vmatprep.subr.mxu0 0.0
    %162 = vmatpush1.msra.mxu0 %v153
    %163 = vmatprep.subr.mxu0 0.0
    %164 = vmatpush1.msra.mxu0 %v152
    %165 = vmatprep.subr.mxu0 0.0
    %166 = vmatpush1.msra.mxu0 %v151
    %167 = vmatprep.subr.mxu0 0.0
    %168 = vmatpush1.msra.mxu0 %v150
    %169 = vmatprep.subr.mxu0 0.0
    %170 = vmatpush1.msra.mxu0 %v149
    %171 = vmatprep.subr.mxu0 0.0
    %172 = vmatpush1.msra.mxu0 %v148
    %173 = vmatprep.subr.mxu0 0.0
    %174 = vmatpush1.msra.mxu0 %v147
    %175 = vmatprep.subr.mxu0 0.0
    %176 = vmatpush1.msra.mxu0 %v146
    %177 = vmatprep.subr.mxu0 0.0
    %178 = vmatpush1.msra.mxu0 %v145
    %179 = vmatprep.subr.mxu0 0.0
    %180 = vmatpush1.msra.mxu0 %v144
    %181 = vmatprep.subr.mxu0 0.0
    %182 = vmatpush1.msra.mxu0 %v143
    %183 = vmatprep.subr.mxu0 0.0
    %184 = vmatpush1.msra.mxu0 %v142
    %185 = vmatprep.subr.mxu0 0.0
    %186 = vmatpush1.msra.mxu0 %v141
    %187 = vmatprep.subr.mxu0 0.0
    %188 = vmatpush1.msra.mxu0 %v140
    %189 = vmatprep.subr.mxu0 0.0
    %190 = vmatpush1.msra.mxu0 %v139
    %191 = vmatprep.subr.mxu0 0.0
    %192 = vmatpush1.msra.mxu0 %v138
    %193 = vmatprep.subr.mxu0 0.0
    %194 = vmatpush2.msra.mxu0 0.0
    %195 = vmatprep.subr.mxu0 0.0
    %196 = vmatpush2.msra.mxu0 0.0
    %197 = vmatprep.subr.mxu0 0.0
    %198 = vmatpush2.msra.mxu0 0.0
    %199 = vmatprep.subr.mxu0 0.0
    %200 = vmatpush2.msra.mxu0 0.0
    %201 = vmatprep.subr.mxu0 0.0
    %202 = vmatpush2.msra.mxu0 0.0
    %203 = vmatprep.subr.mxu0 0.0
    %204 = vmatpush2.msra.mxu0 0.0
    %205 = vmatprep.subr.mxu0 0.0
    %206 = vmatpush2.msra.mxu0 0.0
    %207 = vmatprep.subr.mxu0 0.0
    %208 = vmatpush2.msra.mxu0 0.0
    %209 = vmatprep.subr.mxu0 0.0
    %210 = vmatpush2.msra.mxu0 0.0
    %211 = vmatprep.subr.mxu0 0.0
    %212 = vmatpush2.msra.mxu0 0.0
    %213 = vmatprep.subr.mxu0 0.0
    %214 = vmatpush2.msra.mxu0 0.0
    %215 = vmatprep.subr.mxu0 0.0
    %216 = vmatpush2.msra.mxu0 0.0
    %217 = vmatprep.subr.mxu0 0.0
    %218 = vmatpush2.msra.mxu0 0.0
    %219 = vmatprep.subr.mxu0 0.0
    %220 = vmatpush2.msra.mxu0 0.0
    %221 = vmatprep.subr.mxu0 0.0
    %222 = vmatpush2.msra.mxu0 0.0
    %223 = vmatprep.subr.mxu0 0.0
    %224 = vmatpush2.msra.mxu0 0.0
    %225 = vmatprep.mubr.f32.mxu0 0.0
    %226 = vmatmul.mubr.f32.gmra.mxu0 %v122
    %v227 = vpop.f32.mrf.mxu0
    %v228 = vadd.f32 %v159, %v227
    %v229 = vpop.f32.mrf.mxu0
    %230 = vmatprep.mubr.f32.mxu0 0.0
    %231 = vmatmul.mubr.f32.gmra.mxu0 %v123
    %v232 = vpop.f32.mrf.mxu0
    %v233 = vadd.f32 %v159, %v232
    %v234 = vpop.f32.mrf.mxu0
    %235 = vmatprep.mubr.f32.mxu0 0.0
    %236 = vmatmul.mubr.f32.gmra.mxu0 %v124
    %v237 = vpop.f32.mrf.mxu0
    %v238 = vadd.f32 %v159, %v237
    %v239 = vpop.f32.mrf.mxu0
    %240 = vmatprep.mubr.f32.mxu0 0.0
    %241 = vmatmul.mubr.f32.gmra.mxu0 %v125
    %v242 = vpop.f32.mrf.mxu0
    %v243 = vadd.f32 %v159, %v242
    %v244 = vpop.f32.mrf.mxu0
    %245 = vmatprep.mubr.f32.mxu0 0.0
    %246 = vmatmul.mubr.f32.gmra.mxu0 %v126
    %v247 = vpop.f32.mrf.mxu0
    %v248 = vadd.f32 %v159, %v247
    %v249 = vpop.f32.mrf.mxu0
    %250 = vmatprep.mubr.f32.mxu0 0.0
    %251 = vmatmul.mubr.f32.gmra.mxu0 %v127
    %v252 = vpop.f32.mrf.mxu0
    %v253 = vadd.f32 %v159, %v252
    %v254 = vpop.f32.mrf.mxu0
    %255 = vmatprep.mubr.f32.mxu0 0.0
    %256 = vmatmul.mubr.f32.gmra.mxu0 %v128
    %v257 = vpop.f32.mrf.mxu0
    %v258 = vadd.f32 %v159, %v257
    %v259 = vpop.f32.mrf.mxu0
    %260 = vmatprep.mubr.f32.mxu0 0.0
    %261 = vmatmul.mubr.f32.gmra.mxu0 %v129
    %v262 = vpop.f32.mrf.mxu0
    %v263 = vadd.f32 %v159, %v262
    %v264 = vpop.f32.mrf.mxu0
    %265 = vmatprep.mubr.f32.mxu0 0.0
    %266 = vmatmul.mubr.f32.gmra.mxu0 %v130
    %v267 = vpop.f32.mrf.mxu0
    %v268 = vadd.f32 %v159, %v267
    %v269 = vpop.f32.mrf.mxu0
    %270 = vmatprep.mubr.f32.mxu0 0.0
    %271 = vmatmul.mubr.f32.gmra.mxu0 %v131
    %v272 = vpop.f32.mrf.mxu0
    %v273 = vadd.f32 %v159, %v272
    %v274 = vpop.f32.mrf.mxu0
    %275 = vmatprep.mubr.f32.mxu0 0.0
    %276 = vmatmul.mubr.f32.gmra.mxu0 %v132
    %v277 = vpop.f32.mrf.mxu0
    %v278 = vadd.f32 %v159, %v277
    %v279 = vpop.f32.mrf.mxu0
    %280 = vmatprep.mubr.f32.mxu0 0.0
    %281 = vmatmul.mubr.f32.gmra.mxu0 %v133
    %v282 = vpop.f32.mrf.mxu0
    %v283 = vadd.f32 %v159, %v282
    %v284 = vpop.f32.mrf.mxu0
    %285 = vmatprep.mubr.f32.mxu0 0.0
    %286 = vmatmul.mubr.f32.gmra.mxu0 %v134
    %v287 = vpop.f32.mrf.mxu0
    %v288 = vadd.f32 %v159, %v287
    %v289 = vpop.f32.mrf.mxu0
    %290 = vmatprep.mubr.f32.mxu0 0.0
    %291 = vmatmul.mubr.f32.gmra.mxu0 %v135
    %v292 = vpop.f32.mrf.mxu0
    %v293 = vadd.f32 %v159, %v292
    %v294 = vpop.f32.mrf.mxu0
    %295 = vmatprep.mubr.f32.mxu0 0.0
    %296 = vmatmul.mubr.f32.gmra.mxu0 %v136
    %v297 = vpop.f32.mrf.mxu0
    %v298 = vadd.f32 %v159, %v297
    %v299 = vpop.f32.mrf.mxu0
    %300 = vmatprep.mubr.f32.mxu0 0.0
    %301 = vmatmul.mubr.f32.gmra.mxu0 %v137
    %v302 = vpop.f32.mrf.mxu0
    %v303 = vadd.f32 %v159, %v302
    %v304 = vpop.f32.mrf.mxu0
    %305 = vdwg.mxu0
    %v306 = vld [vmem:[#allocation8] sm:$0xff]
    %v307 = vld [vmem:[#allocation8 + $0x8] sm:$0xff]
    %v308 = vld [vmem:[#allocation8 + $0x10] sm:$0xff]
    %v309 = vld [vmem:[#allocation8 + $0x18] sm:$0xff]
    %v310 = vld [vmem:[#allocation8 + $0x20] sm:$0xff]
    %v311 = vld [vmem:[#allocation8 + $0x28] sm:$0xff]
    %v312 = vld [vmem:[#allocation8 + $0x30] sm:$0xff]
    %v313 = vld [vmem:[#allocation8 + $0x38] sm:$0xff]
    %v314 = vld [vmem:[#allocation8 + $0x40] sm:$0xff]
    %v315 = vld [vmem:[#allocation8 + $0x48] sm:$0xff]
    %v316 = vld [vmem:[#allocation8 + $0x50] sm:$0xff]
    %v317 = vld [vmem:[#allocation8 + $0x58] sm:$0xff]
    %v318 = vld [vmem:[#allocation8 + $0x60] sm:$0xff]
    %v319 = vld [vmem:[#allocation8 + $0x68] sm:$0xff]
    %v320 = vld [vmem:[#allocation8 + $0x70] sm:$0xff]
    %v321 = vld [vmem:[#allocation8 + $0x78] sm:$0xff]
    %v322 = vld [vmem:[#allocation8 + $0x80] sm:$0xff]
    %v323 = vld [vmem:[#allocation8 + $0x88] sm:$0xff]
    %v324 = vld [vmem:[#allocation8 + $0x90] sm:$0xff]
    %v325 = vld [vmem:[#allocation8 + $0x98] sm:$0xff]
    %v326 = vld [vmem:[#allocation8 + $0xa0] sm:$0xff]
    %v327 = vld [vmem:[#allocation8 + $0xa8] sm:$0xff]
    %v328 = vld [vmem:[#allocation8 + $0xb0] sm:$0xff]
    %v329 = vld [vmem:[#allocation8 + $0xb8] sm:$0xff]
    %v330 = vld [vmem:[#allocation8 + $0xc0] sm:$0xff]
    %v331 = vld [vmem:[#allocation8 + $0xc8] sm:$0xff]
    %v332 = vld [vmem:[#allocation8 + $0xd0] sm:$0xff]
    %v333 = vld [vmem:[#allocation8 + $0xd8] sm:$0xff]
    %v334 = vld [vmem:[#allocation8 + $0xe0] sm:$0xff]
    %v335 = vld [vmem:[#allocation8 + $0xe8] sm:$0xff]
    %v336 = vld [vmem:[#allocation8 + $0xf0] sm:$0xff]
    %v337 = vld [vmem:[#allocation8 + $0xf8] sm:$0xff]
    %v338 = vld [vmem:[%s5] sm:$0x3]
    %v340 = vlaneseq
    %v341 = vshrl.u32 %v340, 7
    %v342 = vsub.s32 0, %v341
    %v343 = vrot.slane %v338, %v342
    %v344 = vlaneseq
    %v345 = vshrl.u32 %v344, 7
    %v346 = vsub.s32 1, %v345
    %v347 = vrot.slane %v338, %v346
    %350 = vmatprep.subr.mxu0 %v337
    %351 = vmatpush1.msra.mxu0 %v336
    %352 = vmatprep.subr.mxu0 %v335
    %353 = vmatpush1.msra.mxu0 %v334
    %354 = vmatprep.subr.mxu0 %v333
    %355 = vmatpush1.msra.mxu0 %v332
    %356 = vmatprep.subr.mxu0 %v331
    %357 = vmatpush1.msra.mxu0 %v330
    %358 = vmatprep.subr.mxu0 %v329
    %359 = vmatpush1.msra.mxu0 %v328
    %360 = vmatprep.subr.mxu0 %v327
    %361 = vmatpush1.msra.mxu0 %v326
    %362 = vmatprep.subr.mxu0 %v325
    %363 = vmatpush1.msra.mxu0 %v324
    %364 = vmatprep.subr.mxu0 %v323
    %365 = vmatpush1.msra.mxu0 %v322
    %366 = vmatprep.subr.mxu0 %v321
    %367 = vmatpush1.msra.mxu0 %v320
    %368 = vmatprep.subr.mxu0 %v319
    %369 = vmatpush1.msra.mxu0 %v318
    %370 = vmatprep.subr.mxu0 %v317
    %371 = vmatpush1.msra.mxu0 %v316
    %372 = vmatprep.subr.mxu0 %v315
    %373 = vmatpush1.msra.mxu0 %v314
    %374 = vmatprep.subr.mxu0 %v313
    %375 = vmatpush1.msra.mxu0 %v312
    %376 = vmatprep.subr.mxu0 %v311
    %377 = vmatpush1.msra.mxu0 %v310
    %378 = vmatprep.subr.mxu0 %v309
    %379 = vmatpush1.msra.mxu0 %v308
    %380 = vmatprep.subr.mxu0 %v307
    %381 = vmatpush1.msra.mxu0 %v306
    %382 = vmatprep.subr.mxu0 0.0
    %383 = vmatpush2.msra.mxu0 0.0
    %384 = vmatprep.subr.mxu0 0.0
    %385 = vmatpush2.msra.mxu0 0.0
    %386 = vmatprep.subr.mxu0 0.0
    %387 = vmatpush2.msra.mxu0 0.0
    %388 = vmatprep.subr.mxu0 0.0
    %389 = vmatpush2.msra.mxu0 0.0
    %390 = vmatprep.subr.mxu0 0.0
    %391 = vmatpush2.msra.mxu0 0.0
    %392 = vmatprep.subr.mxu0 0.0
    %393 = vmatpush2.msra.mxu0 0.0
    %394 = vmatprep.subr.mxu0 0.0
    %395 = vmatpush2.msra.mxu0 0.0
    %396 = vmatprep.subr.mxu0 0.0
    %397 = vmatpush2.msra.mxu0 0.0
    %398 = vmatprep.subr.mxu0 0.0
    %399 = vmatpush2.msra.mxu0 0.0
    %400 = vmatprep.subr.mxu0 0.0
    %401 = vmatpush2.msra.mxu0 0.0
    %402 = vmatprep.subr.mxu0 0.0
    %403 = vmatpush2.msra.mxu0 0.0
    %404 = vmatprep.subr.mxu0 0.0
    %405 = vmatpush2.msra.mxu0 0.0
    %406 = vmatprep.subr.mxu0 0.0
    %407 = vmatpush2.msra.mxu0 0.0
    %408 = vmatprep.subr.mxu0 0.0
    %409 = vmatpush2.msra.mxu0 0.0
    %410 = vmatprep.subr.mxu0 0.0
    %411 = vmatpush2.msra.mxu0 0.0
    %412 = vmatprep.subr.mxu0 0.0
    %413 = vmatpush2.msra.mxu0 0.0
    %414 = vmatprep.mubr.f32.mxu0 0.0
    %415 = vmatmul.mubr.f32.gmra.mxu0 %v228
    %v416 = vpop.f32.mrf.mxu0
    %v417 = vadd.f32 %v343, %v416
    %v418 = vpop.f32.mrf.mxu0
    %v419 = vadd.f32 %v347, %v418
    %420 = vmatprep.mubr.f32.mxu0 0.0
    %421 = vmatmul.mubr.f32.gmra.mxu0 %v233
    %v422 = vpop.f32.mrf.mxu0
    %v423 = vadd.f32 %v343, %v422
    %v424 = vpop.f32.mrf.mxu0
    %v425 = vadd.f32 %v347, %v424
    %426 = vmatprep.mubr.f32.mxu0 0.0
    %427 = vmatmul.mubr.f32.gmra.mxu0 %v238
    %v428 = vpop.f32.mrf.mxu0
    %v429 = vadd.f32 %v343, %v428
    %v430 = vpop.f32.mrf.mxu0
    %v431 = vadd.f32 %v347, %v430
    %432 = vmatprep.mubr.f32.mxu0 0.0
    %433 = vmatmul.mubr.f32.gmra.mxu0 %v243
    %v434 = vpop.f32.mrf.mxu0
    %v435 = vadd.f32 %v343, %v434
    %v436 = vpop.f32.mrf.mxu0
    %v437 = vadd.f32 %v347, %v436
    %438 = vmatprep.mubr.f32.mxu0 0.0
    %439 = vmatmul.mubr.f32.gmra.mxu0 %v248
    %v440 = vpop.f32.mrf.mxu0
    %v441 = vadd.f32 %v343, %v440
    %v442 = vpop.f32.mrf.mxu0
    %v443 = vadd.f32 %v347, %v442
    %444 = vmatprep.mubr.f32.mxu0 0.0
    %445 = vmatmul.mubr.f32.gmra.mxu0 %v253
    %v446 = vpop.f32.mrf.mxu0
    %v447 = vadd.f32 %v343, %v446
    %v448 = vpop.f32.mrf.mxu0
    %v449 = vadd.f32 %v347, %v448
    %450 = vmatprep.mubr.f32.mxu0 0.0
    %451 = vmatmul.mubr.f32.gmra.mxu0 %v258
    %v452 = vpop.f32.mrf.mxu0
    %v453 = vadd.f32 %v343, %v452
    %v454 = vpop.f32.mrf.mxu0
    %v455 = vadd.f32 %v347, %v454
    %456 = vmatprep.mubr.f32.mxu0 0.0
    %457 = vmatmul.mubr.f32.gmra.mxu0 %v263
    %v458 = vpop.f32.mrf.mxu0
    %v459 = vadd.f32 %v343, %v458
    %v460 = vpop.f32.mrf.mxu0
    %v461 = vadd.f32 %v347, %v460
    %462 = vmatprep.mubr.f32.mxu0 0.0
    %463 = vmatmul.mubr.f32.gmra.mxu0 %v268
    %v464 = vpop.f32.mrf.mxu0
    %v465 = vadd.f32 %v343, %v464
    %v466 = vpop.f32.mrf.mxu0
    %v467 = vadd.f32 %v347, %v466
    %468 = vmatprep.mubr.f32.mxu0 0.0
    %469 = vmatmul.mubr.f32.gmra.mxu0 %v273
    %v470 = vpop.f32.mrf.mxu0
    %v471 = vadd.f32 %v343, %v470
    %v472 = vpop.f32.mrf.mxu0
    %v473 = vadd.f32 %v347, %v472
    %474 = vmatprep.mubr.f32.mxu0 0.0
    %475 = vmatmul.mubr.f32.gmra.mxu0 %v278
    %v476 = vpop.f32.mrf.mxu0
    %v477 = vadd.f32 %v343, %v476
    %v478 = vpop.f32.mrf.mxu0
    %v479 = vadd.f32 %v347, %v478
    %480 = vmatprep.mubr.f32.mxu0 0.0
    %481 = vmatmul.mubr.f32.gmra.mxu0 %v283
    %v482 = vpop.f32.mrf.mxu0
    %v483 = vadd.f32 %v343, %v482
    %v484 = vpop.f32.mrf.mxu0
    %v485 = vadd.f32 %v347, %v484
    %486 = vmatprep.mubr.f32.mxu0 0.0
    %487 = vmatmul.mubr.f32.gmra.mxu0 %v288
    %v488 = vpop.f32.mrf.mxu0
    %v489 = vadd.f32 %v343, %v488
    %v490 = vpop.f32.mrf.mxu0
    %v491 = vadd.f32 %v347, %v490
    %492 = vmatprep.mubr.f32.mxu0 0.0
    %493 = vmatmul.mubr.f32.gmra.mxu0 %v293
    %v494 = vpop.f32.mrf.mxu0
    %v495 = vadd.f32 %v343, %v494
    %v496 = vpop.f32.mrf.mxu0
    %v497 = vadd.f32 %v347, %v496
    %498 = vmatprep.mubr.f32.mxu0 0.0
    %499 = vmatmul.mubr.f32.gmra.mxu0 %v298
    %v500 = vpop.f32.mrf.mxu0
    %v501 = vadd.f32 %v343, %v500
    %v502 = vpop.f32.mrf.mxu0
    %v503 = vadd.f32 %v347, %v502
    %504 = vmatprep.mubr.f32.mxu0 0.0
    %505 = vmatmul.mubr.f32.gmra.mxu0 %v303
    %v506 = vpop.f32.mrf.mxu0
    %v507 = vadd.f32 %v343, %v506
    %v508 = vpop.f32.mrf.mxu0
    %v509 = vadd.f32 %v347, %v508
    %510 = vdwg.mxu0
    %v511 = vld [vmem:[#allocation5] sm:$0xff]
    %v512 = vld [vmem:[#allocation5 + $0x8] sm:$0xff]
    %v513 = vld [vmem:[#allocation5 + $0x10] sm:$0xff]
    %v514 = vld [vmem:[#allocation5 + $0x18] sm:$0xff]
    %v515 = vld [vmem:[#allocation5 + $0x20] sm:$0xff]
    %v516 = vld [vmem:[#allocation5 + $0x28] sm:$0xff]
    %v517 = vld [vmem:[#allocation5 + $0x30] sm:$0xff]
    %v518 = vld [vmem:[#allocation5 + $0x38] sm:$0xff]
    %v519 = vld [vmem:[#allocation5 + $0x40] sm:$0xff]
    %v520 = vld [vmem:[#allocation5 + $0x48] sm:$0xff]
    %v521 = vld [vmem:[#allocation5 + $0x50] sm:$0xff]
    %v522 = vld [vmem:[#allocation5 + $0x58] sm:$0xff]
    %v523 = vld [vmem:[#allocation5 + $0x60] sm:$0xff]
    %v524 = vld [vmem:[#allocation5 + $0x68] sm:$0xff]
    %v525 = vld [vmem:[#allocation5 + $0x70] sm:$0xff]
    %v526 = vld [vmem:[#allocation5 + $0x78] sm:$0xff]
    %v527 = vmul.f32 %v419, 0.5
    %v528 = vmul.f32 %v425, 0.5
    %v529 = vmul.f32 %v431, 0.5
    %v530 = vmul.f32 %v437, 0.5
    %v531 = vmul.f32 %v443, 0.5
    %v532 = vmul.f32 %v449, 0.5
    %v533 = vmul.f32 %v455, 0.5
    %v534 = vmul.f32 %v461, 0.5
    %v535 = vmul.f32 %v467, 0.5
    %v536 = vmul.f32 %v473, 0.5
    %v537 = vmul.f32 %v479, 0.5
    %v538 = vmul.f32 %v485, 0.5
    %v539 = vmul.f32 %v491, 0.5
    %v540 = vmul.f32 %v497, 0.5
    %v541 = vmul.f32 %v503, 0.5
    %v542 = vmul.f32 %v509, 0.5
    %v543 = vmul.f32 %v527, 1.442695
    %v544 = vpow.pop %v543
    %v545 = vmul.f32 %v528, 1.442695
    %v546 = vpow.pop %v545
    %v547 = vmul.f32 %v529, 1.442695
    %v548 = vpow.pop %v547
    %v549 = vmul.f32 %v530, 1.442695
    %v550 = vpow.pop %v549
    %v551 = vmul.f32 %v531, 1.442695
    %v552 = vpow.pop %v551
    %v553 = vmul.f32 %v532, 1.442695
    %v554 = vpow.pop %v553
    %v555 = vmul.f32 %v533, 1.442695
    %v556 = vpow.pop %v555
    %v557 = vmul.f32 %v534, 1.442695
    %v558 = vpow.pop %v557
    %v559 = vmul.f32 %v535, 1.442695
    %v560 = vpow.pop %v559
    %v561 = vmul.f32 %v536, 1.442695
    %v562 = vpow.pop %v561
    %v563 = vmul.f32 %v537, 1.442695
    %v564 = vpow.pop %v563
    %v565 = vmul.f32 %v538, 1.442695
    %v566 = vpow.pop %v565
    %v567 = vmul.f32 %v539, 1.442695
    %v568 = vpow.pop %v567
    %v569 = vmul.f32 %v540, 1.442695
    %v570 = vpow.pop %v569
    %v571 = vmul.f32 %v541, 1.442695
    %v572 = vpow.pop %v571
    %v573 = vmul.f32 %v542, 1.442695
    %v574 = vpow.pop %v573
    %v575 = vmul.f32 %v511, %v544
    %v576 = vmul.f32 %v512, %v546
    %v577 = vmul.f32 %v513, %v548
    %v578 = vmul.f32 %v514, %v550
    %v579 = vmul.f32 %v515, %v552
    %v580 = vmul.f32 %v516, %v554
    %v581 = vmul.f32 %v517, %v556
    %v582 = vmul.f32 %v518, %v558
    %v583 = vmul.f32 %v519, %v560
    %v584 = vmul.f32 %v520, %v562
    %v585 = vmul.f32 %v521, %v564
    %v586 = vmul.f32 %v522, %v566
    %v587 = vmul.f32 %v523, %v568
    %v588 = vmul.f32 %v524, %v570
    %v589 = vmul.f32 %v525, %v572
    %v590 = vmul.f32 %v526, %v574
    %v591 = vadd.f32 %v417, %v575
    %v592 = vadd.f32 %v423, %v576
    %v593 = vadd.f32 %v429, %v577
    %v594 = vadd.f32 %v435, %v578
    %v595 = vadd.f32 %v441, %v579
    %v596 = vadd.f32 %v447, %v580
    %v597 = vadd.f32 %v453, %v581
    %v598 = vadd.f32 %v459, %v582
    %v599 = vadd.f32 %v465, %v583
    %v600 = vadd.f32 %v471, %v584
    %v601 = vadd.f32 %v477, %v585
    %v602 = vadd.f32 %v483, %v586
    %v603 = vadd.f32 %v489, %v587
    %v604 = vadd.f32 %v495, %v588
    %v605 = vadd.f32 %v501, %v589
    %v606 = vadd.f32 %v507, %v590
    %v607 = vld [vmem:[#allocation10] sm:$0xff]
    %v608 = vld [vmem:[#allocation10 + $0x8] sm:$0xff]
    %v609 = vld [vmem:[#allocation10 + $0x10] sm:$0xff]
    %v610 = vld [vmem:[#allocation10 + $0x18] sm:$0xff]
    %v611 = vld [vmem:[#allocation10 + $0x20] sm:$0xff]
    %v612 = vld [vmem:[#allocation10 + $0x28] sm:$0xff]
    %v613 = vld [vmem:[#allocation10 + $0x30] sm:$0xff]
    %v614 = vld [vmem:[#allocation10 + $0x38] sm:$0xff]
    %v615 = vld [vmem:[#allocation10 + $0x40] sm:$0xff]
    %v616 = vld [vmem:[#allocation10 + $0x48] sm:$0xff]
    %v617 = vld [vmem:[#allocation10 + $0x50] sm:$0xff]
    %v618 = vld [vmem:[#allocation10 + $0x58] sm:$0xff]
    %v619 = vld [vmem:[#allocation10 + $0x60] sm:$0xff]
    %v620 = vld [vmem:[#allocation10 + $0x68] sm:$0xff]
    %v621 = vld [vmem:[#allocation10 + $0x70] sm:$0xff]
    %v622 = vld [vmem:[#allocation10 + $0x78] sm:$0xff]
    %v623 = vld [vmem:[%s7] sm:$0x1]
    %v625 = vlaneseq
    %v626 = vshrl.u32 %v625, 7
    %v627 = vsub.s32 0, %v626
    %v628 = vrot.slane %v623, %v627
    %630 = vmatprep.subr.mxu0 0.0
    %631 = vmatpush1.msra.mxu0 %v622
    %632 = vmatprep.subr.mxu0 0.0
    %633 = vmatpush1.msra.mxu0 %v621
    %634 = vmatprep.subr.mxu0 0.0
    %635 = vmatpush1.msra.mxu0 %v620
    %636 = vmatprep.subr.mxu0 0.0
    %637 = vmatpush1.msra.mxu0 %v619
    %638 = vmatprep.subr.mxu0 0.0
    %639 = vmatpush1.msra.mxu0 %v618
    %640 = vmatprep.subr.mxu0 0.0
    %641 = vmatpush1.msra.mxu0 %v617
    %642 = vmatprep.subr.mxu0 0.0
    %643 = vmatpush1.msra.mxu0 %v616
    %644 = vmatprep.subr.mxu0 0.0
    %645 = vmatpush1.msra.mxu0 %v615
    %646 = vmatprep.subr.mxu0 0.0
    %647 = vmatpush1.msra.mxu0 %v614
    %648 = vmatprep.subr.mxu0 0.0
    %649 = vmatpush1.msra.mxu0 %v613
    %650 = vmatprep.subr.mxu0 0.0
    %651 = vmatpush1.msra.mxu0 %v612
    %652 = vmatprep.subr.mxu0 0.0
    %653 = vmatpush1.msra.mxu0 %v611
    %654 = vmatprep.subr.mxu0 0.0
    %655 = vmatpush1.msra.mxu0 %v610
    %656 = vmatprep.subr.mxu0 0.0
    %657 = vmatpush1.msra.mxu0 %v609
    %658 = vmatprep.subr.mxu0 0.0
    %659 = vmatpush1.msra.mxu0 %v608
    %660 = vmatprep.subr.mxu0 0.0
    %661 = vmatpush1.msra.mxu0 %v607
    %662 = vmatprep.subr.mxu0 0.0
    %663 = vmatpush2.msra.mxu0 0.0
    %664 = vmatprep.subr.mxu0 0.0
    %665 = vmatpush2.msra.mxu0 0.0
    %666 = vmatprep.subr.mxu0 0.0
    %667 = vmatpush2.msra.mxu0 0.0
    %668 = vmatprep.subr.mxu0 0.0
    %669 = vmatpush2.msra.mxu0 0.0
    %670 = vmatprep.subr.mxu0 0.0
    %671 = vmatpush2.msra.mxu0 0.0
    %672 = vmatprep.subr.mxu0 0.0
    %673 = vmatpush2.msra.mxu0 0.0
    %674 = vmatprep.subr.mxu0 0.0
    %675 = vmatpush2.msra.mxu0 0.0
    %676 = vmatprep.subr.mxu0 0.0
    %677 = vmatpush2.msra.mxu0 0.0
    %678 = vmatprep.subr.mxu0 0.0
    %679 = vmatpush2.msra.mxu0 0.0
    %680 = vmatprep.subr.mxu0 0.0
    %681 = vmatpush2.msra.mxu0 0.0
    %682 = vmatprep.subr.mxu0 0.0
    %683 = vmatpush2.msra.mxu0 0.0
    %684 = vmatprep.subr.mxu0 0.0
    %685 = vmatpush2.msra.mxu0 0.0
    %686 = vmatprep.subr.mxu0 0.0
    %687 = vmatpush2.msra.mxu0 0.0
    %688 = vmatprep.subr.mxu0 0.0
    %689 = vmatpush2.msra.mxu0 0.0
    %690 = vmatprep.subr.mxu0 0.0
    %691 = vmatpush2.msra.mxu0 0.0
    %692 = vmatprep.subr.mxu0 0.0
    %693 = vmatpush2.msra.mxu0 0.0
    %694 = vmatprep.mubr.f32.mxu0 0.0
    %695 = vmatmul.mubr.f32.gmra.mxu0 %v591
    %v696 = vpop.f32.mrf.mxu0
    %v697 = vadd.f32 %v628, %v696
    %v698 = vpop.f32.mrf.mxu0
    %699 = vmatprep.mubr.f32.mxu0 0.0
    %700 = vmatmul.mubr.f32.gmra.mxu0 %v592
    %v701 = vpop.f32.mrf.mxu0
    %v702 = vadd.f32 %v628, %v701
    %v703 = vpop.f32.mrf.mxu0
    %704 = vmatprep.mubr.f32.mxu0 0.0
    %705 = vmatmul.mubr.f32.gmra.mxu0 %v593
    %v706 = vpop.f32.mrf.mxu0
    %v707 = vadd.f32 %v628, %v706
    %v708 = vpop.f32.mrf.mxu0
    %709 = vmatprep.mubr.f32.mxu0 0.0
    %710 = vmatmul.mubr.f32.gmra.mxu0 %v594
    %v711 = vpop.f32.mrf.mxu0
    %v712 = vadd.f32 %v628, %v711
    %v713 = vpop.f32.mrf.mxu0
    %714 = vmatprep.mubr.f32.mxu0 0.0
    %715 = vmatmul.mubr.f32.gmra.mxu0 %v595
    %v716 = vpop.f32.mrf.mxu0
    %v717 = vadd.f32 %v628, %v716
    %v718 = vpop.f32.mrf.mxu0
    %719 = vmatprep.mubr.f32.mxu0 0.0
    %720 = vmatmul.mubr.f32.gmra.mxu0 %v596
    %v721 = vpop.f32.mrf.mxu0
    %v722 = vadd.f32 %v628, %v721
    %v723 = vpop.f32.mrf.mxu0
    %724 = vmatprep.mubr.f32.mxu0 0.0
    %725 = vmatmul.mubr.f32.gmra.mxu0 %v597
    %v726 = vpop.f32.mrf.mxu0
    %v727 = vadd.f32 %v628, %v726
    %v728 = vpop.f32.mrf.mxu0
    %729 = vmatprep.mubr.f32.mxu0 0.0
    %730 = vmatmul.mubr.f32.gmra.mxu0 %v598
    %v731 = vpop.f32.mrf.mxu0
    %v732 = vadd.f32 %v628, %v731
    %v733 = vpop.f32.mrf.mxu0
    %734 = vmatprep.mubr.f32.mxu0 0.0
    %735 = vmatmul.mubr.f32.gmra.mxu0 %v599
    %v736 = vpop.f32.mrf.mxu0
    %v737 = vadd.f32 %v628, %v736
    %v738 = vpop.f32.mrf.mxu0
    %739 = vmatprep.mubr.f32.mxu0 0.0
    %740 = vmatmul.mubr.f32.gmra.mxu0 %v600
    %v741 = vpop.f32.mrf.mxu0
    %v742 = vadd.f32 %v628, %v741
    %v743 = vpop.f32.mrf.mxu0
    %744 = vmatprep.mubr.f32.mxu0 0.0
    %745 = vmatmul.mubr.f32.gmra.mxu0 %v601
    %v746 = vpop.f32.mrf.mxu0
    %v747 = vadd.f32 %v628, %v746
    %v748 = vpop.f32.mrf.mxu0
    %749 = vmatprep.mubr.f32.mxu0 0.0
    %750 = vmatmul.mubr.f32.gmra.mxu0 %v602
    %v751 = vpop.f32.mrf.mxu0
    %v752 = vadd.f32 %v628, %v751
    %v753 = vpop.f32.mrf.mxu0
    %754 = vmatprep.mubr.f32.mxu0 0.0
    %755 = vmatmul.mubr.f32.gmra.mxu0 %v603
    %v756 = vpop.f32.mrf.mxu0
    %v757 = vadd.f32 %v628, %v756
    %v758 = vpop.f32.mrf.mxu0
    %759 = vmatprep.mubr.f32.mxu0 0.0
    %760 = vmatmul.mubr.f32.gmra.mxu0 %v604
    %v761 = vpop.f32.mrf.mxu0
    %v762 = vadd.f32 %v628, %v761
    %v763 = vpop.f32.mrf.mxu0
    %764 = vmatprep.mubr.f32.mxu0 0.0
    %765 = vmatmul.mubr.f32.gmra.mxu0 %v605
    %v766 = vpop.f32.mrf.mxu0
    %v767 = vadd.f32 %v628, %v766
    %v768 = vpop.f32.mrf.mxu0
    %769 = vmatprep.mubr.f32.mxu0 0.0
    %770 = vmatmul.mubr.f32.gmra.mxu0 %v606
    %v771 = vpop.f32.mrf.mxu0
    %v772 = vadd.f32 %v628, %v771
    %v773 = vpop.f32.mrf.mxu0
    %774 = vdwg.mxu0
    %v775 = vld [vmem:[#allocation11] sm:$0xff]
    %v776 = vld [vmem:[#allocation11 + $0x8] sm:$0xff]
    %v777 = vld [vmem:[#allocation11 + $0x10] sm:$0xff]
    %v778 = vld [vmem:[#allocation11 + $0x18] sm:$0xff]
    %v779 = vld [vmem:[#allocation11 + $0x20] sm:$0xff]
    %v780 = vld [vmem:[#allocation11 + $0x28] sm:$0xff]
    %v781 = vld [vmem:[#allocation11 + $0x30] sm:$0xff]
    %v782 = vld [vmem:[#allocation11 + $0x38] sm:$0xff]
    %v783 = vld [vmem:[#allocation11 + $0x40] sm:$0xff]
    %v784 = vld [vmem:[#allocation11 + $0x48] sm:$0xff]
    %v785 = vld [vmem:[#allocation11 + $0x50] sm:$0xff]
    %v786 = vld [vmem:[#allocation11 + $0x58] sm:$0xff]
    %v787 = vld [vmem:[#allocation11 + $0x60] sm:$0xff]
    %v788 = vld [vmem:[#allocation11 + $0x68] sm:$0xff]
    %v789 = vld [vmem:[#allocation11 + $0x70] sm:$0xff]
    %v790 = vld [vmem:[#allocation11 + $0x78] sm:$0xff]
    %v791 = vld [vmem:[%s9] sm:$0x1]
    %v793 = vlaneseq
    %v794 = vshrl.u32 %v793, 7
    %v795 = vsub.s32 0, %v794
    %v796 = vrot.slane %v791, %v795
    %798 = vmatprep.subr.mxu0 0.0
    %799 = vmatpush1.msra.mxu0 %v790
    %800 = vmatprep.subr.mxu0 0.0
    %801 = vmatpush1.msra.mxu0 %v789
    %802 = vmatprep.subr.mxu0 0.0
    %803 = vmatpush1.msra.mxu0 %v788
    %804 = vmatprep.subr.mxu0 0.0
    %805 = vmatpush1.msra.mxu0 %v787
    %806 = vmatprep.subr.mxu0 0.0
    %807 = vmatpush1.msra.mxu0 %v786
    %808 = vmatprep.subr.mxu0 0.0
    %809 = vmatpush1.msra.mxu0 %v785
    %810 = vmatprep.subr.mxu0 0.0
    %811 = vmatpush1.msra.mxu0 %v784
    %812 = vmatprep.subr.mxu0 0.0
    %813 = vmatpush1.msra.mxu0 %v783
    %814 = vmatprep.subr.mxu0 0.0
    %815 = vmatpush1.msra.mxu0 %v782
    %816 = vmatprep.subr.mxu0 0.0
    %817 = vmatpush1.msra.mxu0 %v781
    %818 = vmatprep.subr.mxu0 0.0
    %819 = vmatpush1.msra.mxu0 %v780
    %820 = vmatprep.subr.mxu0 0.0
    %821 = vmatpush1.msra.mxu0 %v779
    %822 = vmatprep.subr.mxu0 0.0
    %823 = vmatpush1.msra.mxu0 %v778
    %824 = vmatprep.subr.mxu0 0.0
    %825 = vmatpush1.msra.mxu0 %v777
    %826 = vmatprep.subr.mxu0 0.0
    %827 = vmatpush1.msra.mxu0 %v776
    %828 = vmatprep.subr.mxu0 0.0
    %829 = vmatpush1.msra.mxu0 %v775
    %830 = vmatprep.subr.mxu0 0.0
    %831 = vmatpush2.msra.mxu0 0.0
    %832 = vmatprep.subr.mxu0 0.0
    %833 = vmatpush2.msra.mxu0 0.0
    %834 = vmatprep.subr.mxu0 0.0
    %835 = vmatpush2.msra.mxu0 0.0
    %836 = vmatprep.subr.mxu0 0.0
    %837 = vmatpush2.msra.mxu0 0.0
    %838 = vmatprep.subr.mxu0 0.0
    %839 = vmatpush2.msra.mxu0 0.0
    %840 = vmatprep.subr.mxu0 0.0
    %841 = vmatpush2.msra.mxu0 0.0
    %842 = vmatprep.subr.mxu0 0.0
    %843 = vmatpush2.msra.mxu0 0.0
    %844 = vmatprep.subr.mxu0 0.0
    %845 = vmatpush2.msra.mxu0 0.0
    %846 = vmatprep.subr.mxu0 0.0
    %847 = vmatpush2.msra.mxu0 0.0
    %848 = vmatprep.subr.mxu0 0.0
    %849 = vmatpush2.msra.mxu0 0.0
    %850 = vmatprep.subr.mxu0 0.0
    %851 = vmatpush2.msra.mxu0 0.0
    %852 = vmatprep.subr.mxu0 0.0
    %853 = vmatpush2.msra.mxu0 0.0
    %854 = vmatprep.subr.mxu0 0.0
    %855 = vmatpush2.msra.mxu0 0.0
    %856 = vmatprep.subr.mxu0 0.0
    %857 = vmatpush2.msra.mxu0 0.0
    %858 = vmatprep.subr.mxu0 0.0
    %859 = vmatpush2.msra.mxu0 0.0
    %860 = vmatprep.subr.mxu0 0.0
    %861 = vmatpush2.msra.mxu0 0.0
    %862 = vmatprep.mubr.f32.mxu0 0.0
    %863 = vmatmul.mubr.f32.gmra.mxu0 %v697
    %v864 = vpop.f32.mrf.mxu0
    %v865 = vadd.f32 %v796, %v864
    %v866 = vpop.f32.mrf.mxu0
    %867 = vmatprep.mubr.f32.mxu0 0.0
    %868 = vmatmul.mubr.f32.gmra.mxu0 %v702
    %v869 = vpop.f32.mrf.mxu0
    %v870 = vadd.f32 %v796, %v869
    %v871 = vpop.f32.mrf.mxu0
    %872 = vmatprep.mubr.f32.mxu0 0.0
    %873 = vmatmul.mubr.f32.gmra.mxu0 %v707
    %v874 = vpop.f32.mrf.mxu0
    %v875 = vadd.f32 %v796, %v874
    %v876 = vpop.f32.mrf.mxu0
    %877 = vmatprep.mubr.f32.mxu0 0.0
    %878 = vmatmul.mubr.f32.gmra.mxu0 %v712
    %v879 = vpop.f32.mrf.mxu0
    %v880 = vadd.f32 %v796, %v879
    %v881 = vpop.f32.mrf.mxu0
    %882 = vmatprep.mubr.f32.mxu0 0.0
    %883 = vmatmul.mubr.f32.gmra.mxu0 %v717
    %v884 = vpop.f32.mrf.mxu0
    %v885 = vadd.f32 %v796, %v884
    %v886 = vpop.f32.mrf.mxu0
    %887 = vmatprep.mubr.f32.mxu0 0.0
    %888 = vmatmul.mubr.f32.gmra.mxu0 %v722
    %v889 = vpop.f32.mrf.mxu0
    %v890 = vadd.f32 %v796, %v889
    %v891 = vpop.f32.mrf.mxu0
    %892 = vmatprep.mubr.f32.mxu0 0.0
    %893 = vmatmul.mubr.f32.gmra.mxu0 %v727
    %v894 = vpop.f32.mrf.mxu0
    %v895 = vadd.f32 %v796, %v894
    %v896 = vpop.f32.mrf.mxu0
    %897 = vmatprep.mubr.f32.mxu0 0.0
    %898 = vmatmul.mubr.f32.gmra.mxu0 %v732
    %v899 = vpop.f32.mrf.mxu0
    %v900 = vadd.f32 %v796, %v899
    %v901 = vpop.f32.mrf.mxu0
    %902 = vmatprep.mubr.f32.mxu0 0.0
    %903 = vmatmul.mubr.f32.gmra.mxu0 %v737
    %v904 = vpop.f32.mrf.mxu0
    %v905 = vadd.f32 %v796, %v904
    %v906 = vpop.f32.mrf.mxu0
    %907 = vmatprep.mubr.f32.mxu0 0.0
    %908 = vmatmul.mubr.f32.gmra.mxu0 %v742
    %v909 = vpop.f32.mrf.mxu0
    %v910 = vadd.f32 %v796, %v909
    %v911 = vpop.f32.mrf.mxu0
    %912 = vmatprep.mubr.f32.mxu0 0.0
    %913 = vmatmul.mubr.f32.gmra.mxu0 %v747
    %v914 = vpop.f32.mrf.mxu0
    %v915 = vadd.f32 %v796, %v914
    %v916 = vpop.f32.mrf.mxu0
    %917 = vmatprep.mubr.f32.mxu0 0.0
    %918 = vmatmul.mubr.f32.gmra.mxu0 %v752
    %v919 = vpop.f32.mrf.mxu0
    %v920 = vadd.f32 %v796, %v919
    %v921 = vpop.f32.mrf.mxu0
    %922 = vmatprep.mubr.f32.mxu0 0.0
    %923 = vmatmul.mubr.f32.gmra.mxu0 %v757
    %v924 = vpop.f32.mrf.mxu0
    %v925 = vadd.f32 %v796, %v924
    %v926 = vpop.f32.mrf.mxu0
    %927 = vmatprep.mubr.f32.mxu0 0.0
    %928 = vmatmul.mubr.f32.gmra.mxu0 %v762
    %v929 = vpop.f32.mrf.mxu0
    %v930 = vadd.f32 %v796, %v929
    %v931 = vpop.f32.mrf.mxu0
    %932 = vmatprep.mubr.f32.mxu0 0.0
    %933 = vmatmul.mubr.f32.gmra.mxu0 %v767
    %v934 = vpop.f32.mrf.mxu0
    %v935 = vadd.f32 %v796, %v934
    %v936 = vpop.f32.mrf.mxu0
    %937 = vmatprep.mubr.f32.mxu0 0.0
    %938 = vmatmul.mubr.f32.gmra.mxu0 %v772
    %v939 = vpop.f32.mrf.mxu0
    %v940 = vadd.f32 %v796, %v939
    %v941 = vpop.f32.mrf.mxu0
    %942 = vdwg.mxu0
    %943 = vst [vmem:[#allocation13] sm:$0xff] %v417
    %944 = vst [vmem:[#allocation13 + $0x8] sm:$0xff] %v419
    %945 = vst [vmem:[#allocation13 + $0x10] sm:$0xff] %v423
    %946 = vst [vmem:[#allocation13 + $0x18] sm:$0xff] %v425
    %947 = vst [vmem:[#allocation13 + $0x20] sm:$0xff] %v429
    %948 = vst [vmem:[#allocation13 + $0x28] sm:$0xff] %v431
    %949 = vst [vmem:[#allocation13 + $0x30] sm:$0xff] %v435
    %950 = vst [vmem:[#allocation13 + $0x38] sm:$0xff] %v437
    %951 = vst [vmem:[#allocation13 + $0x40] sm:$0xff] %v441
    %952 = vst [vmem:[#allocation13 + $0x48] sm:$0xff] %v443
    %953 = vst [vmem:[#allocation13 + $0x50] sm:$0xff] %v447
    %954 = vst [vmem:[#allocation13 + $0x58] sm:$0xff] %v449
    %955 = vst [vmem:[#allocation13 + $0x60] sm:$0xff] %v453
    %956 = vst [vmem:[#allocation13 + $0x68] sm:$0xff] %v455
    %957 = vst [vmem:[#allocation13 + $0x70] sm:$0xff] %v459
    %958 = vst [vmem:[#allocation13 + $0x78] sm:$0xff] %v461
    %959 = vst [vmem:[#allocation13 + $0x80] sm:$0xff] %v465
    %960 = vst [vmem:[#allocation13 + $0x88] sm:$0xff] %v467
    %961 = vst [vmem:[#allocation13 + $0x90] sm:$0xff] %v471
    %962 = vst [vmem:[#allocation13 + $0x98] sm:$0xff] %v473
    %963 = vst [vmem:[#allocation13 + $0xa0] sm:$0xff] %v477
    %964 = vst [vmem:[#allocation13 + $0xa8] sm:$0xff] %v479
    %965 = vst [vmem:[#allocation13 + $0xb0] sm:$0xff] %v483
    %966 = vst [vmem:[#allocation13 + $0xb8] sm:$0xff] %v485
    %967 = vst [vmem:[#allocation13 + $0xc0] sm:$0xff] %v489
    %968 = vst [vmem:[#allocation13 + $0xc8] sm:$0xff] %v491
    %969 = vst [vmem:[#allocation13 + $0xd0] sm:$0xff] %v495
    %970 = vst [vmem:[#allocation13 + $0xd8] sm:$0xff] %v497
    %971 = vst [vmem:[#allocation13 + $0xe0] sm:$0xff] %v501
    %972 = vst [vmem:[#allocation13 + $0xe8] sm:$0xff] %v503
    %973 = vst [vmem:[#allocation13 + $0xf0] sm:$0xff] %v507
    %974 = vst [vmem:[#allocation13 + $0xf8] sm:$0xff] %v509
    %975 = vst [vmem:[#allocation14] sm:$0xff] %v591
    %976 = vst [vmem:[#allocation14 + $0x8] sm:$0xff] %v592
    %977 = vst [vmem:[#allocation14 + $0x10] sm:$0xff] %v593
    %978 = vst [vmem:[#allocation14 + $0x18] sm:$0xff] %v594
    %979 = vst [vmem:[#allocation14 + $0x20] sm:$0xff] %v595
    %980 = vst [vmem:[#allocation14 + $0x28] sm:$0xff] %v596
    %981 = vst [vmem:[#allocation14 + $0x30] sm:$0xff] %v597
    %982 = vst [vmem:[#allocation14 + $0x38] sm:$0xff] %v598
    %983 = vst [vmem:[#allocation14 + $0x40] sm:$0xff] %v599
    %984 = vst [vmem:[#allocation14 + $0x48] sm:$0xff] %v600
    %985 = vst [vmem:[#allocation14 + $0x50] sm:$0xff] %v601
    %986 = vst [vmem:[#allocation14 + $0x58] sm:$0xff] %v602
    %987 = vst [vmem:[#allocation14 + $0x60] sm:$0xff] %v603
    %988 = vst [vmem:[#allocation14 + $0x68] sm:$0xff] %v604
    %989 = vst [vmem:[#allocation14 + $0x70] sm:$0xff] %v605
    %990 = vst [vmem:[#allocation14 + $0x78] sm:$0xff] %v606
    %991 = vst [vmem:[#allocation16] sm:$0xff] %v865
    %992 = vst [vmem:[#allocation16 + $0x8] sm:$0xff] %v870
    %993 = vst [vmem:[#allocation16 + $0x10] sm:$0xff] %v875
    %994 = vst [vmem:[#allocation16 + $0x18] sm:$0xff] %v880
    %995 = vst [vmem:[#allocation16 + $0x20] sm:$0xff] %v885
    %996 = vst [vmem:[#allocation16 + $0x28] sm:$0xff] %v890
    %997 = vst [vmem:[#allocation16 + $0x30] sm:$0xff] %v895
    %998 = vst [vmem:[#allocation16 + $0x38] sm:$0xff] %v900
    %999 = vst [vmem:[#allocation16 + $0x40] sm:$0xff] %v905
    %1000 = vst [vmem:[#allocation16 + $0x48] sm:$0xff] %v910
    %1001 = vst [vmem:[#allocation16 + $0x50] sm:$0xff] %v915
    %1002 = vst [vmem:[#allocation16 + $0x58] sm:$0xff] %v920
    %1003 = vst [vmem:[#allocation16 + $0x60] sm:$0xff] %v925
    %1004 = vst [vmem:[#allocation16 + $0x68] sm:$0xff] %v930
    %1005 = vst [vmem:[#allocation16 + $0x70] sm:$0xff] %v935
    %1006 = vst [vmem:[#allocation16 + $0x78] sm:$0xff] %v940
    // Predicated region
    $region66: #{tpu_custom_call.1} parent=1 // pred_check
      _
    $region67: #{tpu_custom_call.1} parent=1 // pred_check_branch
      %1008 = sbr.rel (0) target = $region69
    $region68: #{tpu_custom_call.1} parent=1 // pred_region
      %s1010 = ssub.s32 4096, 4096
      %1011 = vsyncadd [#allocation4], %s1010
      %s1012 = sshll.u32 [#allocation13], 4
      %s1013 = int_to_ptr.vmem [resolvable:$true] %s1012
      %1018 = dma.vmem_to_hbm [thread:$0]  %s1013, 4096, %s10, [#allocation4], 256, 256, 16
    $region69: #{tpu_custom_call.1} parent=1 // pred_fallthru
      _
    // Predicated region
    $region70: #{tpu_custom_call.1} parent=1 // pred_check
      _
    $region71: #{tpu_custom_call.1} parent=1 // pred_check_branch
      %1020 = sbr.rel (0) target = $region73
    $region72: #{tpu_custom_call.1} parent=1 // pred_region
      %s1022 = ssub.s32 2048, 2048
      %1023 = vsyncadd [#allocation15], %s1022
      %s1024 = sshll.u32 [#allocation14], 4
      %s1025 = int_to_ptr.vmem [resolvable:$true] %s1024
      %1030 = dma.vmem_to_hbm [thread:$0]  %s1025, 2048, %s11, [#allocation15], 128, 128, 8
    $region73: #{tpu_custom_call.1} parent=1 // pred_fallthru
      _
    // Predicated region
    $region74: #{tpu_custom_call.1} parent=1 // pred_check
      _
    $region75: #{tpu_custom_call.1} parent=1 // pred_check_branch
      %1032 = sbr.rel (0) target = $region77
    $region76: #{tpu_custom_call.1} parent=1 // pred_region
      %s1034 = ssub.s32 2048, 2048
      %1035 = vsyncadd [#allocation15], %s1034
      %s1036 = sshll.u32 [#allocation16], 4
      %s1037 = int_to_ptr.vmem [resolvable:$true] %s1036
      %1042 = dma.vmem_to_hbm [thread:$0]  %s1037, 2048, %s12, [#allocation15], 128, 128, 8
    $region77: #{tpu_custom_call.1} parent=1 // pred_fallthru
      _
    // Predicated region
    $region78: #{tpu_custom_call.1} parent=1 // pred_check
      _
    $region79: #{tpu_custom_call.1} parent=1 // pred_check_branch
      %1044 = sbr.rel (0) target = $region81
    $region80: #{tpu_custom_call.1} parent=1 // pred_region
      %1045 = dma.done [#allocation4], 4096
    $region81: #{tpu_custom_call.1} parent=1 // pred_fallthru
      _
    // Predicated region
    $region82: #{tpu_custom_call.1} parent=1 // pred_check
      _
    $region83: #{tpu_custom_call.1} parent=1 // pred_check_branch
      %1047 = sbr.rel (0) target = $region85
    $region84: #{tpu_custom_call.1} parent=1 // pred_region
      %1048 = dma.done [#allocation15], 2048
    $region85: #{tpu_custom_call.1} parent=1 // pred_fallthru
      _
    // Predicated region
    $region86: #{tpu_custom_call.1} parent=1 // pred_check
      _
    $region87: #{tpu_custom_call.1} parent=1 // pred_check_branch
      %1050 = sbr.rel (0) target = $region89
    $region88: #{tpu_custom_call.1} parent=1 // pred_region
      %1051 = dma.done [#allocation15], 2048
    $region89: #{tpu_custom_call.1} parent=1 // pred_fallthru
      _
    %1052 = vsyncpa [#allocation3], 1
    %1053 = vsyncpa [#allocation6], 1
    %1054 = vsyncpa [#allocation9], 1
    %1055 = vsyncpa [#allocation12], 1
    %1056 = vsyncpa [#allocation4], 1
    %1057 = vsyncpa [#allocation15], 1

</llo_original>
